<compile_context>
chip_gen: v7x
topology: tpu7x:2x2x1
jax: 0.10.0
libtpu: 0.0.40
codegen_flags: <defaults>
</compile_context>

<pallas_src>
import math

import jax
import jax.numpy as jnp
from jax.experimental import pallas as pl
from jax.experimental.pallas import tpu as pltpu


def encoder_mlp_kernel(x_ref, w1_ref, b1_ref, w2_ref, b2_ref, w3_ref, b3_ref, o_ref):
    """One grid step == TB batch examples, flattened into one MXU row block.

    x_ref  : (TB, L, D) bf16   node features for TB examples
    w1_ref : (D, H) bf16, b1_ref : (1, H) f32
    w2_ref : (H, H) bf16, b2_ref : (1, H) f32
    w3_ref : (1, H) f32        logit head as a row vector (VPU/XLU path)
    b3_ref : (1,)   f32        SMEM scalar
    o_ref  : (1, TB, 1) f32    per-step output block (not grid-resident)
    """
    tb, l, d = x_ref.shape
    hdim = w1_ref.shape[1]

    # Flatten examples x nodes into a single (TB*L, D) slab (leading-dim merge,
    # lane dim untouched -> cheap) so each layer is one big MXU matmul.
    x = x_ref[...].reshape(tb * l, d)

    # Layer 1: bf16 operands, f32 accumulation on the MXU; f32 elementwise.
    h1 = jnp.dot(x, w1_ref[...], preferred_element_type=jnp.float32) + b1_ref[...]
    h1 = jnp.maximum(h1, 0.0)

    # Layer 2: cast activations back to bf16 for the MXU, accumulate in f32.
    h2 = jnp.dot(h1.astype(jnp.bfloat16), w2_ref[...],
                 preferred_element_type=jnp.float32) + b2_ref[...]
    h2 = jnp.maximum(h2, 0.0)

    # Mean-pool over nodes per example, then scalar logit head as a VPU multiply
    # + lane (XLU) reduction -- avoids a 1-column MXU matmul.
    h2_3d = h2.reshape(tb, l, hdim)                 # leading-dim split, lane dim kept
    pooled = jnp.mean(h2_3d, axis=1)                # (TB, H) f32
    logits = jnp.sum(pooled * w3_ref[...], axis=-1, keepdims=True) + b3_ref[0]  # (TB, 1)

    # One store per grid step into this step's own output block.
    o_ref[...] = logits.reshape(1, tb, 1)


def confidence_model_forward(x, params, *, tb=16):
    """logits = encoder(batch); returns shape (B,) float32 logits."""
    B, L, D = x.shape
    H = params["w1"].shape[1]

    tb = max(1, min(tb, B))
    G = pl.cdiv(B, tb)
    Bp = G * tb
    if Bp != B:
        # Padded examples are fully independent (per-example mean-pool); their
        # logits are sliced off below, so they cannot contaminate real rows.
        x = jnp.pad(x, ((0, Bp - B), (0, 0), (0, 0)))

    # bf16 matmul operands at the pallas_call boundary (v6e/v7x MXU peak is
    # bf16; halves HBM traffic for the only O(B*L*D) stream). Accumulation and
    # all elementwise math stay f32 inside the kernel.
    xb = x.astype(jnp.bfloat16)
    w1 = params["w1"].astype(jnp.bfloat16)
    w2 = params["w2"].astype(jnp.bfloat16)

    flops = 2 * Bp * L * D * H + 2 * Bp * L * H * H + 4 * Bp * L * H
    bytes_accessed = (
        xb.size * 2 + w1.size * 2 + w2.size * 2
        + (params["b1"].size + params["b2"].size
           + params["w3"].size + params["b3"].size) * 4
        + Bp * 4
    )

    out = pl.pallas_call(
        encoder_mlp_kernel,
        out_shape=jax.ShapeDtypeStruct((G, tb, 1), jnp.float32),
        grid_spec=pltpu.PrefetchScalarGridSpec(
            num_scalar_prefetch=0,
            grid=(G,),
            in_specs=[
                # TB examples per step; last two block dims equal full array dims.
                pl.BlockSpec((tb, L, D), lambda g: (g, 0, 0)),
                # Weights/biases: constant index_map -> VMEM-resident, no re-DMA.
                pl.BlockSpec((D, H), lambda g: (0, 0)),
                pl.BlockSpec((1, H), lambda g: (0, 0)),
                pl.BlockSpec((H, H), lambda g: (0, 0)),
                pl.BlockSpec((1, H), lambda g: (0, 0)),
                pl.BlockSpec((1, H), lambda g: (0, 0)),
                # b3 as a scalar in SMEM.
                pl.BlockSpec(memory_space=pltpu.MemorySpace.SMEM),
            ],
            # Per-step output block: no grid-resident output, no masked scatter.
            out_specs=pl.BlockSpec((1, tb, 1), lambda g: (g, 0, 0)),
        ),
        compiler_params=pltpu.CompilerParams(
            # Batch groups are independent -> shards across TCs on v7x megacore.
            dimension_semantics=("parallel",),
        ),
        cost_estimate=pl.CostEstimate(
            flops=int(flops), transcendentals=0, bytes_accessed=int(bytes_accessed)),
    )(
        xb,
        w1, params["b1"],
        w2, params["b2"],
        params["w3"], params["b3"],
    )
    return out.reshape(Bp)[:B]


def _xavier_normal(key, shape):
    fan_in, fan_out = shape
    std = math.sqrt(2.0 / (fan_in + fan_out))
    return std * jax.random.normal(key, shape, dtype=jnp.float32)


def init_params(key, D, H):
    """BaseModel._init semantics: xavier_normal for matrices, zeros for 1-D params."""
    k1, k2, k3 = jax.random.split(key, 3)
    return {
        "w1": _xavier_normal(k1, (D, H)),
        "b1": jnp.zeros((1, H), jnp.float32),
        "w2": _xavier_normal(k2, (H, H)),
        "b2": jnp.zeros((1, H), jnp.float32),
        # Logit head stored as a row (1, H); same xavier fan as an (H, 1) weight.
        "w3": _xavier_normal(k3, (1, H)),
        "b3": jnp.zeros((1,), jnp.float32),
    }


def reference_forward(x, params):
    """Pure-JAX reference with the same bf16-operand / f32-accumulation recipe."""
    xb = x.astype(jnp.bfloat16)
    w1 = params["w1"].astype(jnp.bfloat16)
    w2 = params["w2"].astype(jnp.bfloat16)
    h1 = jnp.maximum(
        jnp.einsum("bld,dh->blh", xb, w1, preferred_element_type=jnp.float32)
        + params["b1"][0], 0.0)
    h2 = jnp.maximum(
        jnp.einsum("blh,hk->blk", h1.astype(jnp.bfloat16), w2,
                   preferred_element_type=jnp.float32)
        + params["b2"][0], 0.0)
    pooled = jnp.mean(h2, axis=1)                       # (B, H)
    return pooled @ params["w3"][0] + params["b3"][0]   # (B,)


if __name__ == "__main__":
    # TB*L = 256 rows per step (fills the 256-wide v6e/v7x MXU, >= v5e's 128);
    # D = H = 128 (lane-dense).  G = 2 grid steps -> spans both TCs on v7x.
    B, L, D, H = 32, 16, 128, 128
    TB = 16

    key = jax.random.PRNGKey(0)
    kx, kp = jax.random.split(key)

    x = jax.random.normal(kx, (B, L, D), dtype=jnp.float32)
    params = init_params(kp, D, H)

    logits = confidence_model_forward(x, params, tb=TB)
    logits = jax.block_until_ready(logits)

    ref = reference_forward(x, params)
    assert logits.shape == (B,)
    assert jnp.allclose(logits, ref, atol=2e-3, rtol=2e-3), (logits, ref)

    print("KERNEL_OK")
</pallas_src>

<mosaic_0001>
module attributes {stable_mosaic.version = 11 : i64} {
  func.func @encoder_mlp_kernel(%arg0: i32, %arg1: memref<16x16x128xbf16, #tpu.memory_space<vmem>>, %arg2: memref<128x128xbf16, #tpu.memory_space<vmem>>, %arg3: memref<1x128xf32, #tpu.memory_space<vmem>>, %arg4: memref<128x128xbf16, #tpu.memory_space<vmem>>, %arg5: memref<1x128xf32, #tpu.memory_space<vmem>>, %arg6: memref<1x128xf32, #tpu.memory_space<vmem>>, %arg7: memref<1xf32, #tpu.memory_space<smem>>, %arg8: memref<1x16x1xf32, #tpu.memory_space<vmem>>) attributes {dimension_semantics = [#tpu.dimension_semantics<parallel>], iteration_bounds = array<i64: 2>, scalar_prefetch = 0 : i64, scratch_operands = 0 : i64, tpu.core_type = #tpu.core_type<tc>, window_params = [{transform_indices = @transform_0, window_bounds = array<i64: 16, 16, 128>}, {pipeline_mode = #tpu.pipeline_mode<synchronous>, transform_indices = @transform_1, window_bounds = array<i64: 128, 128>}, {pipeline_mode = #tpu.pipeline_mode<synchronous>, transform_indices = @transform_2, window_bounds = array<i64: 1, 128>}, {pipeline_mode = #tpu.pipeline_mode<synchronous>, transform_indices = @transform_3, window_bounds = array<i64: 128, 128>}, {pipeline_mode = #tpu.pipeline_mode<synchronous>, transform_indices = @transform_4, window_bounds = array<i64: 1, 128>}, {pipeline_mode = #tpu.pipeline_mode<synchronous>, transform_indices = @transform_5, window_bounds = array<i64: 1, 128>}, {transform_indices = @transform_6, window_bounds = array<i64: 1>}, {transform_indices = @transform_7, window_bounds = array<i64: 1, 16, 1>}]} {
    %c0 = arith.constant 0 : index
    %c0_0 = arith.constant 0 : index
    %c0_1 = arith.constant 0 : index
    %0 = vector.load %arg1[%c0, %c0_0, %c0_1] : memref<16x16x128xbf16, #tpu.memory_space<vmem>>, vector<16x16x128xbf16>
    %1 = vector.shape_cast %0 : vector<16x16x128xbf16> to vector<256x128xbf16>
    %c0_2 = arith.constant 0 : index
    %c0_3 = arith.constant 0 : index
    %2 = vector.load %arg2[%c0_2, %c0_3] : memref<128x128xbf16, #tpu.memory_space<vmem>>, vector<128x128xbf16>
    %cst = arith.constant dense<0.000000e+00> : vector<256x128xf32>
    %3 = tpu.matmul %1, %2, %cst {dimension_numbers = #tpu.dot_dimension_numbers<[1], [0], [0], [1], [0, 0, 1, 1], [], []>} : vector<256x128xbf16>, vector<128x128xbf16>, vector<256x128xf32> -> vector<256x128xf32>
    %c0_4 = arith.constant 0 : index
    %c0_5 = arith.constant 0 : index
    %4 = vector.load %arg3[%c0_4, %c0_5] : memref<1x128xf32, #tpu.memory_space<vmem>>, vector<1x128xf32>
    %5 = vector.broadcast %4 : vector<1x128xf32> to vector<256x128xf32>
    %6 = arith.addf %3, %5 : vector<256x128xf32>
    %cst_6 = arith.constant 0.000000e+00 : f32
    %7 = vector.broadcast %cst_6 : f32 to vector<256x128xf32>
    %8 = arith.maximumf %6, %7 : vector<256x128xf32>
    %9 = arith.truncf %8 : vector<256x128xf32> to vector<256x128xbf16>
    %c0_7 = arith.constant 0 : index
    %c0_8 = arith.constant 0 : index
    %10 = vector.load %arg4[%c0_7, %c0_8] : memref<128x128xbf16, #tpu.memory_space<vmem>>, vector<128x128xbf16>
    %cst_9 = arith.constant dense<0.000000e+00> : vector<256x128xf32>
    %11 = tpu.matmul %9, %10, %cst_9 {dimension_numbers = #tpu.dot_dimension_numbers<[1], [0], [0], [1], [0, 0, 1, 1], [], []>} : vector<256x128xbf16>, vector<128x128xbf16>, vector<256x128xf32> -> vector<256x128xf32>
    %c0_10 = arith.constant 0 : index
    %c0_11 = arith.constant 0 : index
    %12 = vector.load %arg5[%c0_10, %c0_11] : memref<1x128xf32, #tpu.memory_space<vmem>>, vector<1x128xf32>
    %13 = vector.broadcast %12 : vector<1x128xf32> to vector<256x128xf32>
    %14 = arith.addf %11, %13 : vector<256x128xf32>
    %cst_12 = arith.constant 0.000000e+00 : f32
    %15 = vector.broadcast %cst_12 : f32 to vector<256x128xf32>
    %16 = arith.maximumf %14, %15 : vector<256x128xf32>
    %17 = vector.shape_cast %16 : vector<256x128xf32> to vector<16x16x128xf32>
    %cst_13 = arith.constant dense<0.000000e+00> : vector<16x128xf32>
    %18 = vector.multi_reduction <add>, %17, %cst_13 [1] : vector<16x16x128xf32> to vector<16x128xf32>
    %cst_14 = arith.constant 1.600000e+01 : f32
    %19 = vector.broadcast %cst_14 : f32 to vector<16x128xf32>
    %20 = arith.divf %18, %19 : vector<16x128xf32>
    %c0_15 = arith.constant 0 : index
    %c0_16 = arith.constant 0 : index
    %21 = vector.load %arg6[%c0_15, %c0_16] : memref<1x128xf32, #tpu.memory_space<vmem>>, vector<1x128xf32>
    %22 = vector.broadcast %21 : vector<1x128xf32> to vector<16x128xf32>
    %23 = arith.mulf %20, %22 : vector<16x128xf32>
    %cst_17 = arith.constant dense<0.000000e+00> : vector<16xf32>
    %24 = vector.multi_reduction <add>, %23, %cst_17 [1] : vector<16x128xf32> to vector<16xf32>
    %25 = vector.shape_cast %24 : vector<16xf32> to vector<16x1xf32>
    %c0_18 = arith.constant 0 : index
    %26 = memref.load %arg7[%c0_18] : memref<1xf32, #tpu.memory_space<smem>>
    %27 = vector.broadcast %26 : f32 to vector<16x1xf32>
    %28 = arith.addf %25, %27 : vector<16x1xf32>
    %29 = vector.shape_cast %28 : vector<16x1xf32> to vector<1x16x1xf32>
    %c0_19 = arith.constant 0 : index
    %c0_20 = arith.constant 0 : index
    %c0_21 = arith.constant 0 : index
    %30 = vector.load %arg8[%c0_19, %c0_20, %c0_21] : memref<1x16x1xf32, #tpu.memory_space<vmem>>, vector<1x16x1xf32>
    tpu.vector_store %arg8[%c0_19, %c0_20, %c0_21], %29 {strides = array<i32>} : memref<1x16x1xf32, #tpu.memory_space<vmem>>, vector<1x16x1xf32>,
    return
  }
  func.func @transform_0(%arg0: i32) -> (i32, i32, i32) {
    %c0_i32 = arith.constant 0 : i32
    %c0_i32_0 = arith.constant 0 : i32
    %c0_i32_1 = arith.constant 0 : i32
    return %arg0, %c0_i32, %c0_i32_0 : i32, i32, i32
  }
  func.func @transform_1(%arg0: i32) -> (i32, i32) {
    %c0_i32 = arith.constant 0 : i32
    %c0_i32_0 = arith.constant 0 : i32
    %c0_i32_1 = arith.constant 0 : i32
    return %c0_i32, %c0_i32_0 : i32, i32
  }
  func.func @transform_2(%arg0: i32) -> (i32, i32) {
    %c0_i32 = arith.constant 0 : i32
    %c0_i32_0 = arith.constant 0 : i32
    %c0_i32_1 = arith.constant 0 : i32
    return %c0_i32, %c0_i32_0 : i32, i32
  }
  func.func @transform_3(%arg0: i32) -> (i32, i32) {
    %c0_i32 = arith.constant 0 : i32
    %c0_i32_0 = arith.constant 0 : i32
    %c0_i32_1 = arith.constant 0 : i32
    return %c0_i32, %c0_i32_0 : i32, i32
  }
  func.func @transform_4(%arg0: i32) -> (i32, i32) {
    %c0_i32 = arith.constant 0 : i32
    %c0_i32_0 = arith.constant 0 : i32
    %c0_i32_1 = arith.constant 0 : i32
    return %c0_i32, %c0_i32_0 : i32, i32
  }
  func.func @transform_5(%arg0: i32) -> (i32, i32) {
    %c0_i32 = arith.constant 0 : i32
    %c0_i32_0 = arith.constant 0 : i32
    %c0_i32_1 = arith.constant 0 : i32
    return %c0_i32, %c0_i32_0 : i32, i32
  }
  func.func @transform_6(%arg0: i32) -> i32 {
    %c0_i32 = arith.constant 0 : i32
    %c0_i32_0 = arith.constant 0 : i32
    return %c0_i32 : i32
  }
  func.func @transform_7(%arg0: i32) -> (i32, i32, i32) {
    %c0_i32 = arith.constant 0 : i32
    %c0_i32_0 = arith.constant 0 : i32
    %c0_i32_1 = arith.constant 0 : i32
    return %arg0, %c0_i32, %c0_i32_0 : i32, i32, i32
  }
}

</mosaic_0001>

<llo_original>
// kernel: tpu_custom_call.1
$region0: #{tpu_custom_call.1}
  #allocation0 [shape = 'u32[]', space=smem, size = 0x4, offset = 0x4, fixed_abs, tag = 'smem constant byte address 0x4 - core index']
  #allocation1 [shape = 'u32[144,128]{1,0:T(1,128)}', space=vmem, size = 0x12000, scoped, tag = 'internal scratch']
  #allocation2 [shape = 'f32[1]{0:T(128)S(6)}', space=smem, size = 0x200, scoped, tag = 'scoped memory for tpu_custom_call.1']
  %s0 = inlined_call_operand.hbm [shape: bf16[32,16,128], index: 0, kind: input, shape index: {}]
  %s1 = inlined_call_operand.hbm [shape: bf16[128,128], index: 1, kind: input, shape index: {}]
  %s2 = inlined_call_operand.vmem [shape: f32[1,128], index: 2, kind: input, shape index: {}]
  %s3 = inlined_call_operand.hbm [shape: bf16[128,128], index: 3, kind: input, shape index: {}]
  %s4 = inlined_call_operand.vmem [shape: f32[1,128], index: 4, kind: input, shape index: {}]
  %s5 = inlined_call_operand.vmem [shape: f32[1,128], index: 5, kind: input, shape index: {}]
  %s6 = inlined_call_operand.<no memory space> [shape: f32[1], index: 6, kind: input, shape index: {}]
  %s7 = inlined_call_operand.vmem [shape: f32[2,16,1], index: 7, kind: output, shape index: {}]
  %s8 = sld [smem:[#allocation0]]
  $region73: #{tpu_custom_call.1} parent=0
    _
  %s10 = ssub.s32 1, %s8
  %s11 = scalar_select 0, %s10, %s8
  %12 = sst [smem:[#allocation2]] %s6
  $region1: #{tpu_custom_call.1} parent=0
    #allocation3 [shape = 'u8[131072]{0}', space=vmem, size = 0x20000, scoped, tag = 'input window, operand 0']
    #allocation4 [shape = 's32[2]{0}', space=sflag, size = 0x8, scoped, tag = 'scoped memory for tpu_custom_call.1']
    #allocation5 [shape = 'u8[32768]{0}', space=vmem, size = 0x8000, scoped, tag = 'input window, operand 1, single buffered']
    #allocation6 [shape = 's32[1]{0}', space=sflag, size = 0x4, scoped, tag = 'scoped memory for tpu_custom_call.1']
    #allocation7 [shape = 'u8[32768]{0}', space=vmem, size = 0x8000, scoped, tag = 'input window, operand 3, single buffered']
    %13 = vsyncpa [#allocation4], 0
    %s14 = scalar_lea.sflag [#allocation4], 1
    %15 = vsyncpa %s14, 0
    %16 = vsyncpa [#allocation6], 0
    loop: start=0, step=1, limit=4
    $region2: #{tpu_custom_call.1} parent=1 // loop_pre_header
      _
    $region3: #{tpu_custom_call.1} parent=1 // loop_header
      %s18 = sphi 0, %s22
      %p19 = scmp.ge.s32.totalorder %s18, 4
      %s28 = sphi 0, %s30
      %s31 = sphi 0, %s28
      %s32 = sphi 0, %s31
      %s48 = sphi 0, %s32
      %s52 = sphi 0, %s52
      %s54 = sphi 0, %s52
      %s55 = sphi 0, %s54
      %s69 = sphi 0, %s55
      %s73 = sphi 0, %s73
      %s75 = sphi 0, %s73
      %s76 = sphi 0, %s75
      %s90 = sphi 0, %s76
      %s94 = sphi 0, %s94
      %s96 = sphi 0, %s94
      %s97 = sphi 0, %s96
      %s111 = sphi 0, %s97
      %s115 = sphi 0, %s115
      %s117 = sphi 0, %s115
      %s118 = sphi 0, %s117
      %s132 = sphi 0, %s118
      %s136 = sphi 0, %s136
      %s138 = sphi 0, %s136
      %s139 = sphi 0, %s138
      %s153 = sphi 0, %s139
      %s157 = sphi 0, %s157
      %s159 = sphi 0, %s157
      %s160 = sphi 0, %s159
      %s174 = sphi 0, %s160
      %s180 = sphi 0, %s182
      %s183 = sphi 0, %s180
      %s184 = sphi 0, %s183
      %s200 = sphi 0, %s184
    $region4: #{tpu_custom_call.1} parent=1 // loop_header_branch
      %21 = sbr.rel (%p19) target = $region8
    $region5: #{tpu_custom_call.1} parent=1 // loop_body
      %s23 = ssub.s32 %s18, 1
      %s24 = ssub.s32 %s18, 2
      %s25 = sadd.s32 %s18, 1
      %s26 = ssub.s32 %s18, %s25
      %p27 = scmp.eq.s32.totalorder %s26, 0
      %s29 = sadd.s32 %s28, 1
      %s30 = scalar_select %p27, %s28, %s29
      %p33 = pneg %p27
      %p34 = scmp.eq.s32.totalorder %s18, 1
      %p35 = por %p33, %p34
      %p36 = scmp.ne.s32.totalorder %s28, %s31
      %p37 = scmp.eq.s32.totalorder %s18, 0
      %p38 = por %p36, %p37
      %p39 = scmp.ne.s32.totalorder %s28, %s31
      %p40 = scmp.eq.s32.totalorder %s23, 1
      %p41 = por %p39, %p40
      %p42 = scmp.ne.s32.totalorder %s31, %s32
      %p43 = scmp.eq.s32.totalorder %s23, 0
      %p44 = por %p42, %p43
      %p45 = scmp.ne.s32.totalorder %s31, %s32
      %p46 = scmp.eq.s32.totalorder %s24, 1
      %p47 = por %p45, %p46
      %p49 = scmp.ne.s32.totalorder %s32, %s48
      %p50 = scmp.eq.s32.totalorder %s24, 0
      %p51 = por %p49, %p50
      %s53 = sadd.s32 %s52, 1
      %p56 = scmp.eq.s32.totalorder %s18, 1
      %p57 = scmp.ne.s32.totalorder %s52, %s54
      %p58 = scmp.eq.s32.totalorder %s18, 0
      %p59 = por %p57, %p58
      %p60 = scmp.ne.s32.totalorder %s52, %s54
      %p61 = scmp.eq.s32.totalorder %s23, 1
      %p62 = por %p60, %p61
      %p63 = scmp.ne.s32.totalorder %s54, %s55
      %p64 = scmp.eq.s32.totalorder %s23, 0
      %p65 = por %p63, %p64
      %p66 = scmp.ne.s32.totalorder %s54, %s55
      %p67 = scmp.eq.s32.totalorder %s24, 1
      %p68 = por %p66, %p67
      %p70 = scmp.ne.s32.totalorder %s55, %s69
      %p71 = scmp.eq.s32.totalorder %s24, 0
      %p72 = por %p70, %p71
      %s74 = sadd.s32 %s73, 1
      %p77 = scmp.eq.s32.totalorder %s18, 1
      %p78 = scmp.ne.s32.totalorder %s73, %s75
      %p79 = scmp.eq.s32.totalorder %s18, 0
      %p80 = por %p78, %p79
      %p81 = scmp.ne.s32.totalorder %s73, %s75
      %p82 = scmp.eq.s32.totalorder %s23, 1
      %p83 = por %p81, %p82
      %p84 = scmp.ne.s32.totalorder %s75, %s76
      %p85 = scmp.eq.s32.totalorder %s23, 0
      %p86 = por %p84, %p85
      %p87 = scmp.ne.s32.totalorder %s75, %s76
      %p88 = scmp.eq.s32.totalorder %s24, 1
      %p89 = por %p87, %p88
      %p91 = scmp.ne.s32.totalorder %s76, %s90
      %p92 = scmp.eq.s32.totalorder %s24, 0
      %p93 = por %p91, %p92
      %s95 = sadd.s32 %s94, 1
      %p98 = scmp.eq.s32.totalorder %s18, 1
      %p99 = scmp.ne.s32.totalorder %s94, %s96
      %p100 = scmp.eq.s32.totalorder %s18, 0
      %p101 = por %p99, %p100
      %p102 = scmp.ne.s32.totalorder %s94, %s96
      %p103 = scmp.eq.s32.totalorder %s23, 1
      %p104 = por %p102, %p103
      %p105 = scmp.ne.s32.totalorder %s96, %s97
      %p106 = scmp.eq.s32.totalorder %s23, 0
      %p107 = por %p105, %p106
      %p108 = scmp.ne.s32.totalorder %s96, %s97
      %p109 = scmp.eq.s32.totalorder %s24, 1
      %p110 = por %p108, %p109
      %p112 = scmp.ne.s32.totalorder %s97, %s111
      %p113 = scmp.eq.s32.totalorder %s24, 0
      %p114 = por %p112, %p113
      %s116 = sadd.s32 %s115, 1
      %p119 = scmp.eq.s32.totalorder %s18, 1
      %p120 = scmp.ne.s32.totalorder %s115, %s117
      %p121 = scmp.eq.s32.totalorder %s18, 0
      %p122 = por %p120, %p121
      %p123 = scmp.ne.s32.totalorder %s115, %s117
      %p124 = scmp.eq.s32.totalorder %s23, 1
      %p125 = por %p123, %p124
      %p126 = scmp.ne.s32.totalorder %s117, %s118
      %p127 = scmp.eq.s32.totalorder %s23, 0
      %p128 = por %p126, %p127
      %p129 = scmp.ne.s32.totalorder %s117, %s118
      %p130 = scmp.eq.s32.totalorder %s24, 1
      %p131 = por %p129, %p130
      %p133 = scmp.ne.s32.totalorder %s118, %s132
      %p134 = scmp.eq.s32.totalorder %s24, 0
      %p135 = por %p133, %p134
      %s137 = sadd.s32 %s136, 1
      %p140 = scmp.eq.s32.totalorder %s18, 1
      %p141 = scmp.ne.s32.totalorder %s136, %s138
      %p142 = scmp.eq.s32.totalorder %s18, 0
      %p143 = por %p141, %p142
      %p144 = scmp.ne.s32.totalorder %s136, %s138
      %p145 = scmp.eq.s32.totalorder %s23, 1
      %p146 = por %p144, %p145
      %p147 = scmp.ne.s32.totalorder %s138, %s139
      %p148 = scmp.eq.s32.totalorder %s23, 0
      %p149 = por %p147, %p148
      %p150 = scmp.ne.s32.totalorder %s138, %s139
      %p151 = scmp.eq.s32.totalorder %s24, 1
      %p152 = por %p150, %p151
      %p154 = scmp.ne.s32.totalorder %s139, %s153
      %p155 = scmp.eq.s32.totalorder %s24, 0
      %p156 = por %p154, %p155
      %s158 = sadd.s32 %s157, 1
      %p161 = scmp.eq.s32.totalorder %s18, 1
      %p162 = scmp.ne.s32.totalorder %s157, %s159
      %p163 = scmp.eq.s32.totalorder %s18, 0
      %p164 = por %p162, %p163
      %p165 = scmp.ne.s32.totalorder %s157, %s159
      %p166 = scmp.eq.s32.totalorder %s23, 1
      %p167 = por %p165, %p166
      %p168 = scmp.ne.s32.totalorder %s159, %s160
      %p169 = scmp.eq.s32.totalorder %s23, 0
      %p170 = por %p168, %p169
      %p171 = scmp.ne.s32.totalorder %s159, %s160
      %p172 = scmp.eq.s32.totalorder %s24, 1
      %p173 = por %p171, %p172
      %p175 = scmp.ne.s32.totalorder %s160, %s174
      %p176 = scmp.eq.s32.totalorder %s24, 0
      %p177 = por %p175, %p176
      %s178 = ssub.s32 %s18, %s25
      %p179 = scmp.eq.s32.totalorder %s178, 0
      %s181 = sadd.s32 %s180, 1
      %s182 = scalar_select %p179, %s180, %s181
      %p185 = pneg %p179
      %p186 = scmp.eq.s32.totalorder %s18, 1
      %p187 = por %p185, %p186
      %p188 = scmp.ne.s32.totalorder %s180, %s183
      %p189 = scmp.eq.s32.totalorder %s18, 0
      %p190 = por %p188, %p189
      %p191 = scmp.ne.s32.totalorder %s180, %s183
      %p192 = scmp.eq.s32.totalorder %s23, 1
      %p193 = por %p191, %p192
      %p194 = scmp.ne.s32.totalorder %s183, %s184
      %p195 = scmp.eq.s32.totalorder %s23, 0
      %p196 = por %p194, %p195
      %p197 = scmp.ne.s32.totalorder %s183, %s184
      %p198 = scmp.eq.s32.totalorder %s24, 1
      %p199 = por %p197, %p198
      %p201 = scmp.ne.s32.totalorder %s184, %s200
      %p202 = scmp.eq.s32.totalorder %s24, 0
      %p203 = por %p201, %p202
      %p204 = scmp.le.s32.totalorder 1, %s18
      %p205 = scmp.lt.s32.totalorder %s18, 3
      %p206 = pnand %p204, %p205
      %p207 = pneg %p206
      // Predicated region
      $region9: #{tpu_custom_call.1} parent=5 // pred_check
        _
      $region10: #{tpu_custom_call.1} parent=5 // pred_check_branch
        %209 = sbr.rel (%p206) target = $region12
      $region11: #{tpu_custom_call.1} parent=5 // pred_region
        %s210 = ssub.s32 %s18, 1
        // Predicated region
        $region13: #{tpu_custom_call.1} parent=11 // pred_check
          %p211 = pneg %p65
        $region14: #{tpu_custom_call.1} parent=11 // pred_check_branch
          %213 = sbr.rel (%p211) target = $region16
        $region15: #{tpu_custom_call.1} parent=11 // pred_region
          %s215 = ssub.s32 1024, 1024
          %216 = vsyncadd [#allocation6], %s215
          %s217 = sshll.u32 [#allocation5], 4
          %s218 = int_to_ptr.vmem [resolvable:$true] %s217
          %223 = dma.hbm_to_vmem [thread:$0]  %s1, 1024, %s218, [#allocation6], 64, 64, 4
        $region16: #{tpu_custom_call.1} parent=11 // pred_fallthru
          _
        // Predicated region
        $region17: #{tpu_custom_call.1} parent=11 // pred_check
          %p224 = pneg %p86
        $region18: #{tpu_custom_call.1} parent=11 // pred_check_branch
          %226 = sbr.rel (%p224) target = $region20
        $region19: #{tpu_custom_call.1} parent=11 // pred_region
          _
        $region20: #{tpu_custom_call.1} parent=11 // pred_fallthru
          _
        // Predicated region
        $region21: #{tpu_custom_call.1} parent=11 // pred_check
          %p227 = pneg %p107
        $region22: #{tpu_custom_call.1} parent=11 // pred_check_branch
          %229 = sbr.rel (%p227) target = $region24
        $region23: #{tpu_custom_call.1} parent=11 // pred_region
          %s231 = ssub.s32 1024, 1024
          %232 = vsyncadd [#allocation6], %s231
          %s233 = sshll.u32 [#allocation7], 4
          %s234 = int_to_ptr.vmem [resolvable:$true] %s233
          %239 = dma.hbm_to_vmem [thread:$0]  %s3, 1024, %s234, [#allocation6], 64, 64, 4
        $region24: #{tpu_custom_call.1} parent=11 // pred_fallthru
          _
        // Predicated region
        $region25: #{tpu_custom_call.1} parent=11 // pred_check
          %p240 = pneg %p128
        $region26: #{tpu_custom_call.1} parent=11 // pred_check_branch
          %242 = sbr.rel (%p240) target = $region28
        $region27: #{tpu_custom_call.1} parent=11 // pred_region
          _
        $region28: #{tpu_custom_call.1} parent=11 // pred_fallthru
          _
        // Predicated region
        $region29: #{tpu_custom_call.1} parent=11 // pred_check
          %p243 = pneg %p149
        $region30: #{tpu_custom_call.1} parent=11 // pred_check_branch
          %245 = sbr.rel (%p243) target = $region32
        $region31: #{tpu_custom_call.1} parent=11 // pred_region
          _
        $region32: #{tpu_custom_call.1} parent=11 // pred_fallthru
          _
        // Predicated region
        $region33: #{tpu_custom_call.1} parent=11 // pred_check
          %p246 = pneg %p170
        $region34: #{tpu_custom_call.1} parent=11 // pred_check_branch
          %248 = sbr.rel (%p246) target = $region36
        $region35: #{tpu_custom_call.1} parent=11 // pred_region
          _
        $region36: #{tpu_custom_call.1} parent=11 // pred_fallthru
          _
      $region12: #{tpu_custom_call.1} parent=5 // pred_fallthru
        _
      %p249 = scmp.lt.s32.totalorder %s18, 2
      // Predicated region
      $region37: #{tpu_custom_call.1} parent=5 // pred_check
        %p250 = pneg %p249
      $region38: #{tpu_custom_call.1} parent=5 // pred_check_branch
        %252 = sbr.rel (%p250) target = $region40
      $region39: #{tpu_custom_call.1} parent=5 // pred_region
        // Predicated region
        $region41: #{tpu_custom_call.1} parent=39 // pred_check
          %p253 = pneg %p38
        $region42: #{tpu_custom_call.1} parent=39 // pred_check_branch
          %255 = sbr.rel (%p253) target = $region44
        $region43: #{tpu_custom_call.1} parent=39 // pred_region
          %s256 = sand.u32 %s28, 1
          %s257 = scalar_lea.sflag [#allocation4], %s256
          %s258 = sand.u32 %s28, 1
          %s259 = smul.addr %s258, 128
          %s260 = scalar_lea.vmem [#allocation3], %s259
          %s261 = smul.u32 16, %s18
          %s263 = ssub.s32 2048, 2048
          %264 = vsyncadd %s257, %s263
          %s265 = smul.addr %s261, 2
          %s266 = smul.addr %s265, 64
          %s267 = scalar_lea.hbm %s0, %s266
          %s268 = sshll.u32 %s260, 4
          %s269 = int_to_ptr.vmem [resolvable:$true] %s268
          %274 = dma.hbm_to_vmem [thread:$0]  %s267, 2048, %s269, %s257, 64, 64, 4
        $region44: #{tpu_custom_call.1} parent=39 // pred_fallthru
          _
      $region40: #{tpu_custom_call.1} parent=5 // pred_fallthru
        _
      %p275 = scmp.le.s32.totalorder 1, %s18
      %p276 = scmp.lt.s32.totalorder %s18, 3
      %p277 = pnand %p275, %p276
      %p278 = pneg %p277
      // Predicated region
      $region45: #{tpu_custom_call.1} parent=5 // pred_check
        _
      $region46: #{tpu_custom_call.1} parent=5 // pred_check_branch
        %280 = sbr.rel (%p277) target = $region48
      $region47: #{tpu_custom_call.1} parent=5 // pred_region
        %s281 = ssub.s32 %s18, 1
        %s282 = sand.u32 %s31, 1
        %s283 = scalar_lea.sflag [#allocation4], %s282
        %s284 = sand.u32 %s31, 1
        %s285 = smul.addr %s284, 128
        %s286 = scalar_lea.vmem [#allocation3], %s285
        // Predicated region
        $region49: #{tpu_custom_call.1} parent=47 // pred_check
          %p287 = pneg %p44
        $region50: #{tpu_custom_call.1} parent=47 // pred_check_branch
          %289 = sbr.rel (%p287) target = $region52
        $region51: #{tpu_custom_call.1} parent=47 // pred_region
          %290 = dma.done %s283, 2048
        $region52: #{tpu_custom_call.1} parent=47 // pred_fallthru
          _
        // Predicated region
        $region53: #{tpu_custom_call.1} parent=47 // pred_check
          %p291 = pneg %p65
        $region54: #{tpu_custom_call.1} parent=47 // pred_check_branch
          %293 = sbr.rel (%p291) target = $region56
        $region55: #{tpu_custom_call.1} parent=47 // pred_region
          %294 = dma.done [#allocation6], 1024
        $region56: #{tpu_custom_call.1} parent=47 // pred_fallthru
          _
        // Predicated region
        $region57: #{tpu_custom_call.1} parent=47 // pred_check
          %p295 = pneg %p107
        $region58: #{tpu_custom_call.1} parent=47 // pred_check_branch
          %297 = sbr.rel (%p295) target = $region60
        $region59: #{tpu_custom_call.1} parent=47 // pred_region
          %298 = dma.done [#allocation6], 1024
        $region60: #{tpu_custom_call.1} parent=47 // pred_fallthru
          _
        %s299 = sand.u32 %s31, 1
        %s300 = scalar_lea.sflag [#allocation4], %s299
        %s301 = sand.u32 %s31, 1
        %s302 = smul.addr %s301, 128
        %s303 = scalar_lea.vmem [#allocation3], %s302
        %p304 = pneg %p44
        %p305 = pneg %p41
        %p306 = pneg %p65
        %p307 = pneg %p62
        %p308 = pneg %p86
        %p309 = pneg %p83
        %p310 = pneg %p107
        %p311 = pneg %p104
        %p312 = pneg %p128
        %p313 = pneg %p125
        %p314 = pneg %p149
        %p315 = pneg %p146
        %p316 = pneg %p170
        %p317 = pneg %p167
        %p318 = pneg %p196
        %p319 = pneg %p193
        %p320 = scmp.lt.s32.totalorder %s23, 1
        %s321 = scalar_select %p320, %s23, 1
        %s322 = smul.addr %s321, 2
        %s323 = smul.addr %s322, 8
        %s324 = scalar_lea.vmem %s7, %s323
        %s325 = smul.u32 16, %s23
        %p326 = scmp.lt.s32.totalorder %s23, 1
        %s327 = scalar_select %p326, %s23, 1
        %s328 = smul.addr %s327, 2
        %s329 = smul.addr %s328, 8
        %s330 = scalar_lea.vmem %s7, %s329
        %v332 = vld [vmem:[%s286] sm:$0xf]
        %v333 = vld [vmem:[%s286 + $0x4] sm:$0xf]
        %v334 = vld [vmem:[%s286 + $0x8] sm:$0xf]
        %v335 = vld [vmem:[%s286 + $0xc] sm:$0xf]
        %v336 = vld [vmem:[%s286 + $0x10] sm:$0xf]
        %v337 = vld [vmem:[%s286 + $0x14] sm:$0xf]
        %v338 = vld [vmem:[%s286 + $0x18] sm:$0xf]
        %v339 = vld [vmem:[%s286 + $0x1c] sm:$0xf]
        %v340 = vld [vmem:[%s286 + $0x20] sm:$0xf]
        %v341 = vld [vmem:[%s286 + $0x24] sm:$0xf]
        %v342 = vld [vmem:[%s286 + $0x28] sm:$0xf]
        %v343 = vld [vmem:[%s286 + $0x2c] sm:$0xf]
        %v344 = vld [vmem:[%s286 + $0x30] sm:$0xf]
        %v345 = vld [vmem:[%s286 + $0x34] sm:$0xf]
        %v346 = vld [vmem:[%s286 + $0x38] sm:$0xf]
        %v347 = vld [vmem:[%s286 + $0x3c] sm:$0xf]
        %v348 = vld [vmem:[%s286 + $0x40] sm:$0xf]
        %v349 = vld [vmem:[%s286 + $0x44] sm:$0xf]
        %v350 = vld [vmem:[%s286 + $0x48] sm:$0xf]
        %v351 = vld [vmem:[%s286 + $0x4c] sm:$0xf]
        %v352 = vld [vmem:[%s286 + $0x50] sm:$0xf]
        %v353 = vld [vmem:[%s286 + $0x54] sm:$0xf]
        %v354 = vld [vmem:[%s286 + $0x58] sm:$0xf]
        %v355 = vld [vmem:[%s286 + $0x5c] sm:$0xf]
        %v356 = vld [vmem:[%s286 + $0x60] sm:$0xf]
        %v357 = vld [vmem:[%s286 + $0x64] sm:$0xf]
        %v358 = vld [vmem:[%s286 + $0x68] sm:$0xf]
        %v359 = vld [vmem:[%s286 + $0x6c] sm:$0xf]
        %v360 = vld [vmem:[%s286 + $0x70] sm:$0xf]
        %v361 = vld [vmem:[%s286 + $0x74] sm:$0xf]
        %v362 = vld [vmem:[%s286 + $0x78] sm:$0xf]
        %v363 = vld [vmem:[%s286 + $0x7c] sm:$0xf]
        %v364 = vld [vmem:[#allocation5] sm:$0xf]
        %v365 = vld [vmem:[#allocation5 + $0x4] sm:$0xf]
        %v366 = vld [vmem:[#allocation5 + $0x8] sm:$0xf]
        %v367 = vld [vmem:[#allocation5 + $0xc] sm:$0xf]
        %v368 = vld [vmem:[#allocation5 + $0x10] sm:$0xf]
        %v369 = vld [vmem:[#allocation5 + $0x14] sm:$0xf]
        %v370 = vld [vmem:[#allocation5 + $0x18] sm:$0xf]
        %v371 = vld [vmem:[#allocation5 + $0x1c] sm:$0xf]
        %v372 = vld [vmem:[#allocation5 + $0x20] sm:$0xf]
        %v373 = vld [vmem:[#allocation5 + $0x24] sm:$0xf]
        %v374 = vld [vmem:[#allocation5 + $0x28] sm:$0xf]
        %v375 = vld [vmem:[#allocation5 + $0x2c] sm:$0xf]
        %v376 = vld [vmem:[#allocation5 + $0x30] sm:$0xf]
        %v377 = vld [vmem:[#allocation5 + $0x34] sm:$0xf]
        %v378 = vld [vmem:[#allocation5 + $0x38] sm:$0xf]
        %v379 = vld [vmem:[#allocation5 + $0x3c] sm:$0xf]
        %v380 = vld [vmem:[%s2] sm:$0x1]
        %v382 = vlaneseq
        %v383 = vshrl.u32 %v382, 7
        %v384 = vsub.s32 0, %v383
        %v385 = vrot.slane %v380, %v384
        %v419 = vunpack.c.l.b16 %v332
        %v420 = vunpack.c.l.b16 %v333
        %v421 = vunpack.c.l.b16 %v334
        %v422 = vunpack.c.l.b16 %v335
        %v423 = vunpack.c.l.b16 %v336
        %v424 = vunpack.c.l.b16 %v337
        %v425 = vunpack.c.l.b16 %v338
        %v426 = vunpack.c.l.b16 %v339
        %v427 = vunpack.c.l.b16 %v340
        %v428 = vunpack.c.l.b16 %v341
        %v429 = vunpack.c.l.b16 %v342
        %v430 = vunpack.c.l.b16 %v343
        %v431 = vunpack.c.l.b16 %v344
        %v432 = vunpack.c.l.b16 %v345
        %v433 = vunpack.c.l.b16 %v346
        %v434 = vunpack.c.l.b16 %v347
        %v435 = vunpack.c.l.b16 %v348
        %v436 = vunpack.c.l.b16 %v349
        %v437 = vunpack.c.l.b16 %v350
        %v438 = vunpack.c.l.b16 %v351
        %v439 = vunpack.c.l.b16 %v352
        %v440 = vunpack.c.l.b16 %v353
        %v441 = vunpack.c.l.b16 %v354
        %v442 = vunpack.c.l.b16 %v355
        %v443 = vunpack.c.l.b16 %v356
        %v444 = vunpack.c.l.b16 %v357
        %v445 = vunpack.c.l.b16 %v358
        %v446 = vunpack.c.l.b16 %v359
        %v447 = vunpack.c.l.b16 %v360
        %v448 = vunpack.c.l.b16 %v361
        %v449 = vunpack.c.l.b16 %v362
        %v450 = vunpack.c.l.b16 %v363
        %v451 = vpack.c.b16 %v420, %v419
        %v452 = vpack.c.b16 %v422, %v421
        %v453 = vpack.c.b16 %v424, %v423
        %v454 = vpack.c.b16 %v426, %v425
        %v455 = vpack.c.b16 %v428, %v427
        %v456 = vpack.c.b16 %v430, %v429
        %v457 = vpack.c.b16 %v432, %v431
        %v458 = vpack.c.b16 %v434, %v433
        %v459 = vpack.c.b16 %v436, %v435
        %v460 = vpack.c.b16 %v438, %v437
        %v461 = vpack.c.b16 %v440, %v439
        %v462 = vpack.c.b16 %v442, %v441
        %v463 = vpack.c.b16 %v444, %v443
        %v464 = vpack.c.b16 %v446, %v445
        %v465 = vpack.c.b16 %v448, %v447
        %v466 = vpack.c.b16 %v450, %v449
        %v499 = vunpack.c.l.b16 %v364
        %v500 = vunpack.c.l.b16 %v365
        %v501 = vunpack.c.l.b16 %v366
        %v502 = vunpack.c.l.b16 %v367
        %v503 = vunpack.c.l.b16 %v368
        %v504 = vunpack.c.l.b16 %v369
        %v505 = vunpack.c.l.b16 %v370
        %v506 = vunpack.c.l.b16 %v371
        %v507 = vunpack.c.l.b16 %v372
        %v508 = vunpack.c.l.b16 %v373
        %v509 = vunpack.c.l.b16 %v374
        %v510 = vunpack.c.l.b16 %v375
        %v511 = vunpack.c.l.b16 %v376
        %v512 = vunpack.c.l.b16 %v377
        %v513 = vunpack.c.l.b16 %v378
        %v514 = vunpack.c.l.b16 %v379
        %v515 = vpack.c.b16 %v500, %v499
        %v516 = vpack.c.b16 %v502, %v501
        %v517 = vpack.c.b16 %v504, %v503
        %v518 = vpack.c.b16 %v506, %v505
        %v519 = vpack.c.b16 %v508, %v507
        %v520 = vpack.c.b16 %v510, %v509
        %v521 = vpack.c.b16 %v512, %v511
        %v522 = vpack.c.b16 %v514, %v513
        %531 = vmatprep.subr.bf16.mxu0 0
        %532 = vmatpush1.bf16.msra.mxu0 %v515
        %533 = vmatprep.subr.bf16.mxu0 0
        %534 = vmatpush1.bf16.msra.mxu0 %v516
        %535 = vmatprep.subr.bf16.mxu0 0
        %536 = vmatpush1.bf16.msra.mxu0 %v517
        %537 = vmatprep.subr.bf16.mxu0 0
        %538 = vmatpush1.bf16.msra.mxu0 %v518
        %539 = vmatprep.subr.bf16.mxu0 0
        %540 = vmatpush1.bf16.msra.mxu0 %v519
        %541 = vmatprep.subr.bf16.mxu0 0
        %542 = vmatpush1.bf16.msra.mxu0 %v520
        %543 = vmatprep.subr.bf16.mxu0 0
        %544 = vmatpush1.bf16.msra.mxu0 %v521
        %545 = vmatprep.subr.bf16.mxu0 0
        %546 = vmatpush1.bf16.msra.mxu0 %v522
        %547 = vmatprep.subr.bf16.mxu0 0
        %548 = vmatpush1.bf16.msra.mxu0 0
        %549 = vmatprep.subr.bf16.mxu0 0
        %550 = vmatpush1.bf16.msra.mxu0 0
        %551 = vmatprep.subr.bf16.mxu0 0
        %552 = vmatpush1.bf16.msra.mxu0 0
        %553 = vmatprep.subr.bf16.mxu0 0
        %554 = vmatpush1.bf16.msra.mxu0 0
        %555 = vmatprep.subr.bf16.mxu0 0
        %556 = vmatpush1.bf16.msra.mxu0 0
        %557 = vmatprep.subr.bf16.mxu0 0
        %558 = vmatpush1.bf16.msra.mxu0 0
        %559 = vmatprep.subr.bf16.mxu0 0
        %560 = vmatpush1.bf16.msra.mxu0 0
        %561 = vmatprep.subr.bf16.mxu0 0
        %562 = vmatpush1.bf16.msra.mxu0 0
        %563 = vmatprep.mubr.bf16.mxu0 0
        %564 = vmatmul.mubr.bf16.gmra.mrb[0].mxu0 %v451
        %v565 = vpop.f32.mrb[0].mxu0
        %v566 = vadd.f32 %v385, %v565
        %v567 = vpop.f32.mrb[0].mxu0
        %v568 = vpop.f32.mrb[0].mxu0
        %v569 = vadd.f32 %v385, %v568
        %v570 = vpop.f32.mrb[0].mxu0
        %571 = vmatprep.mubr.bf16.mxu0 0
        %572 = vmatmul.mubr.bf16.gmra.mrb[0].mxu0 %v452
        %v573 = vpop.f32.mrb[0].mxu0
        %v574 = vadd.f32 %v385, %v573
        %v575 = vpop.f32.mrb[0].mxu0
        %v576 = vpop.f32.mrb[0].mxu0
        %v577 = vadd.f32 %v385, %v576
        %v578 = vpop.f32.mrb[0].mxu0
        %579 = vmatprep.mubr.bf16.mxu0 0
        %580 = vmatmul.mubr.bf16.gmra.mrb[0].mxu0 %v453
        %v581 = vpop.f32.mrb[0].mxu0
        %v582 = vadd.f32 %v385, %v581
        %v583 = vpop.f32.mrb[0].mxu0
        %v584 = vpop.f32.mrb[0].mxu0
        %v585 = vadd.f32 %v385, %v584
        %v586 = vpop.f32.mrb[0].mxu0
        %587 = vmatprep.mubr.bf16.mxu0 0
        %588 = vmatmul.mubr.bf16.gmra.mrb[0].mxu0 %v454
        %v589 = vpop.f32.mrb[0].mxu0
        %v590 = vadd.f32 %v385, %v589
        %v591 = vpop.f32.mrb[0].mxu0
        %v592 = vpop.f32.mrb[0].mxu0
        %v593 = vadd.f32 %v385, %v592
        %v594 = vpop.f32.mrb[0].mxu0
        %595 = vmatprep.mubr.bf16.mxu0 0
        %596 = vmatmul.mubr.bf16.gmra.mrb[0].mxu0 %v455
        %v597 = vpop.f32.mrb[0].mxu0
        %v598 = vadd.f32 %v385, %v597
        %v599 = vpop.f32.mrb[0].mxu0
        %v600 = vpop.f32.mrb[0].mxu0
        %v601 = vadd.f32 %v385, %v600
        %v602 = vpop.f32.mrb[0].mxu0
        %603 = vmatprep.mubr.bf16.mxu0 0
        %604 = vmatmul.mubr.bf16.gmra.mrb[0].mxu0 %v456
        %v605 = vpop.f32.mrb[0].mxu0
        %v606 = vadd.f32 %v385, %v605
        %v607 = vpop.f32.mrb[0].mxu0
        %v608 = vpop.f32.mrb[0].mxu0
        %v609 = vadd.f32 %v385, %v608
        %v610 = vpop.f32.mrb[0].mxu0
        %611 = vmatprep.mubr.bf16.mxu0 0
        %612 = vmatmul.mubr.bf16.gmra.mrb[0].mxu0 %v457
        %v613 = vpop.f32.mrb[0].mxu0
        %v614 = vadd.f32 %v385, %v613
        %v615 = vpop.f32.mrb[0].mxu0
        %v616 = vpop.f32.mrb[0].mxu0
        %v617 = vadd.f32 %v385, %v616
        %v618 = vpop.f32.mrb[0].mxu0
        %619 = vmatprep.mubr.bf16.mxu0 0
        %620 = vmatmul.mubr.bf16.gmra.mrb[0].mxu0 %v458
        %v621 = vpop.f32.mrb[0].mxu0
        %v622 = vadd.f32 %v385, %v621
        %v623 = vpop.f32.mrb[0].mxu0
        %v624 = vpop.f32.mrb[0].mxu0
        %v625 = vadd.f32 %v385, %v624
        %v626 = vpop.f32.mrb[0].mxu0
        %627 = vmatprep.mubr.bf16.mxu0 0
        %628 = vmatmul.mubr.bf16.gmra.mrb[0].mxu0 %v459
        %v629 = vpop.f32.mrb[0].mxu0
        %v630 = vadd.f32 %v385, %v629
        %v631 = vpop.f32.mrb[0].mxu0
        %v632 = vpop.f32.mrb[0].mxu0
        %v633 = vadd.f32 %v385, %v632
        %v634 = vpop.f32.mrb[0].mxu0
        %635 = vmatprep.mubr.bf16.mxu0 0
        %636 = vmatmul.mubr.bf16.gmra.mrb[0].mxu0 %v460
        %v637 = vpop.f32.mrb[0].mxu0
        %v638 = vadd.f32 %v385, %v637
        %v639 = vpop.f32.mrb[0].mxu0
        %v640 = vpop.f32.mrb[0].mxu0
        %v641 = vadd.f32 %v385, %v640
        %v642 = vpop.f32.mrb[0].mxu0
        %643 = vmatprep.mubr.bf16.mxu0 0
        %644 = vmatmul.mubr.bf16.gmra.mrb[0].mxu0 %v461
        %v645 = vpop.f32.mrb[0].mxu0
        %v646 = vadd.f32 %v385, %v645
        %v647 = vpop.f32.mrb[0].mxu0
        %v648 = vpop.f32.mrb[0].mxu0
        %v649 = vadd.f32 %v385, %v648
        %v650 = vpop.f32.mrb[0].mxu0
        %651 = vmatprep.mubr.bf16.mxu0 0
        %652 = vmatmul.mubr.bf16.gmra.mrb[0].mxu0 %v462
        %v653 = vpop.f32.mrb[0].mxu0
        %v654 = vadd.f32 %v385, %v653
        %v655 = vpop.f32.mrb[0].mxu0
        %v656 = vpop.f32.mrb[0].mxu0
        %v657 = vadd.f32 %v385, %v656
        %v658 = vpop.f32.mrb[0].mxu0
        %659 = vmatprep.mubr.bf16.mxu0 0
        %660 = vmatmul.mubr.bf16.gmra.mrb[0].mxu0 %v463
        %v661 = vpop.f32.mrb[0].mxu0
        %v662 = vadd.f32 %v385, %v661
        %v663 = vpop.f32.mrb[0].mxu0
        %v664 = vpop.f32.mrb[0].mxu0
        %v665 = vadd.f32 %v385, %v664
        %v666 = vpop.f32.mrb[0].mxu0
        %667 = vmatprep.mubr.bf16.mxu0 0
        %668 = vmatmul.mubr.bf16.gmra.mrb[0].mxu0 %v464
        %v669 = vpop.f32.mrb[0].mxu0
        %v670 = vadd.f32 %v385, %v669
        %v671 = vpop.f32.mrb[0].mxu0
        %v672 = vpop.f32.mrb[0].mxu0
        %v673 = vadd.f32 %v385, %v672
        %v674 = vpop.f32.mrb[0].mxu0
        %675 = vmatprep.mubr.bf16.mxu0 0
        %676 = vmatmul.mubr.bf16.gmra.mrb[0].mxu0 %v465
        %v677 = vpop.f32.mrb[0].mxu0
        %v678 = vadd.f32 %v385, %v677
        %v679 = vpop.f32.mrb[0].mxu0
        %v680 = vpop.f32.mrb[0].mxu0
        %v681 = vadd.f32 %v385, %v680
        %v682 = vpop.f32.mrb[0].mxu0
        %683 = vmatprep.mubr.bf16.mxu0 0
        %684 = vmatmul.mubr.bf16.gmra.mrb[0].mxu0 %v466
        %v685 = vpop.f32.mrb[0].mxu0
        %v686 = vadd.f32 %v385, %v685
        %v687 = vpop.f32.mrb[0].mxu0
        %v688 = vpop.f32.mrb[0].mxu0
        %v689 = vadd.f32 %v385, %v688
        %v690 = vpop.f32.mrb[0].mxu0
        %691 = vdwg.mxu0
        %v692 = vmax.f32 %v566, 0.0
        %v693 = vmax.f32 %v569, 0.0
        %v694 = vmax.f32 %v574, 0.0
        %v695 = vmax.f32 %v577, 0.0
        %v696 = vmax.f32 %v582, 0.0
        %v697 = vmax.f32 %v585, 0.0
        %v698 = vmax.f32 %v590, 0.0
        %v699 = vmax.f32 %v593, 0.0
        %v700 = vmax.f32 %v598, 0.0
        %v701 = vmax.f32 %v601, 0.0
        %v702 = vmax.f32 %v606, 0.0
        %v703 = vmax.f32 %v609, 0.0
        %v704 = vmax.f32 %v614, 0.0
        %v705 = vmax.f32 %v617, 0.0
        %v706 = vmax.f32 %v622, 0.0
        %v707 = vmax.f32 %v625, 0.0
        %v708 = vmax.f32 %v630, 0.0
        %v709 = vmax.f32 %v633, 0.0
        %v710 = vmax.f32 %v638, 0.0
        %v711 = vmax.f32 %v641, 0.0
        %v712 = vmax.f32 %v646, 0.0
        %v713 = vmax.f32 %v649, 0.0
        %v714 = vmax.f32 %v654, 0.0
        %v715 = vmax.f32 %v657, 0.0
        %v716 = vmax.f32 %v662, 0.0
        %v717 = vmax.f32 %v665, 0.0
        %v718 = vmax.f32 %v670, 0.0
        %v719 = vmax.f32 %v673, 0.0
        %v720 = vmax.f32 %v678, 0.0
        %v721 = vmax.f32 %v681, 0.0
        %v722 = vmax.f32 %v686, 0.0
        %v723 = vmax.f32 %v689, 0.0
        %v724 = vpack.c.bf16 %v693, %v692
        %v725 = vpack.c.bf16 %v695, %v694
        %v726 = vpack.c.bf16 %v697, %v696
        %v727 = vpack.c.bf16 %v699, %v698
        %v728 = vpack.c.bf16 %v701, %v700
        %v729 = vpack.c.bf16 %v703, %v702
        %v730 = vpack.c.bf16 %v705, %v704
        %v731 = vpack.c.bf16 %v707, %v706
        %v732 = vpack.c.bf16 %v709, %v708
        %v733 = vpack.c.bf16 %v711, %v710
        %v734 = vpack.c.bf16 %v713, %v712
        %v735 = vpack.c.bf16 %v715, %v714
        %v736 = vpack.c.bf16 %v717, %v716
        %v737 = vpack.c.bf16 %v719, %v718
        %v738 = vpack.c.bf16 %v721, %v720
        %v739 = vpack.c.bf16 %v723, %v722
        %v740 = vld [vmem:[#allocation7] sm:$0xf]
        %v741 = vld [vmem:[#allocation7 + $0x4] sm:$0xf]
        %v742 = vld [vmem:[#allocation7 + $0x8] sm:$0xf]
        %v743 = vld [vmem:[#allocation7 + $0xc] sm:$0xf]
        %v744 = vld [vmem:[#allocation7 + $0x10] sm:$0xf]
        %v745 = vld [vmem:[#allocation7 + $0x14] sm:$0xf]
        %v746 = vld [vmem:[#allocation7 + $0x18] sm:$0xf]
        %v747 = vld [vmem:[#allocation7 + $0x1c] sm:$0xf]
        %v748 = vld [vmem:[#allocation7 + $0x20] sm:$0xf]
        %v749 = vld [vmem:[#allocation7 + $0x24] sm:$0xf]
        %v750 = vld [vmem:[#allocation7 + $0x28] sm:$0xf]
        %v751 = vld [vmem:[#allocation7 + $0x2c] sm:$0xf]
        %v752 = vld [vmem:[#allocation7 + $0x30] sm:$0xf]
        %v753 = vld [vmem:[#allocation7 + $0x34] sm:$0xf]
        %v754 = vld [vmem:[#allocation7 + $0x38] sm:$0xf]
        %v755 = vld [vmem:[#allocation7 + $0x3c] sm:$0xf]
        %v756 = vld [vmem:[%s4] sm:$0x1]
        %v758 = vlaneseq
        %v759 = vshrl.u32 %v758, 7
        %v760 = vsub.s32 0, %v759
        %v761 = vrot.slane %v756, %v760
        %v779 = vunpack.c.l.b16 %v740
        %v780 = vunpack.c.l.b16 %v741
        %v781 = vunpack.c.l.b16 %v742
        %v782 = vunpack.c.l.b16 %v743
        %v783 = vunpack.c.l.b16 %v744
        %v784 = vunpack.c.l.b16 %v745
        %v785 = vunpack.c.l.b16 %v746
        %v786 = vunpack.c.l.b16 %v747
        %v787 = vunpack.c.l.b16 %v748
        %v788 = vunpack.c.l.b16 %v749
        %v789 = vunpack.c.l.b16 %v750
        %v790 = vunpack.c.l.b16 %v751
        %v791 = vunpack.c.l.b16 %v752
        %v792 = vunpack.c.l.b16 %v753
        %v793 = vunpack.c.l.b16 %v754
        %v794 = vunpack.c.l.b16 %v755
        %v795 = vpack.c.b16 %v780, %v779
        %v796 = vpack.c.b16 %v782, %v781
        %v797 = vpack.c.b16 %v784, %v783
        %v798 = vpack.c.b16 %v786, %v785
        %v799 = vpack.c.b16 %v788, %v787
        %v800 = vpack.c.b16 %v790, %v789
        %v801 = vpack.c.b16 %v792, %v791
        %v802 = vpack.c.b16 %v794, %v793
        %811 = vmatprep.subr.bf16.mxu0 0
        %812 = vmatpush1.bf16.msra.mxu0 %v795
        %813 = vmatprep.subr.bf16.mxu0 0
        %814 = vmatpush1.bf16.msra.mxu0 %v796
        %815 = vmatprep.subr.bf16.mxu0 0
        %816 = vmatpush1.bf16.msra.mxu0 %v797
        %817 = vmatprep.subr.bf16.mxu0 0
        %818 = vmatpush1.bf16.msra.mxu0 %v798
        %819 = vmatprep.subr.bf16.mxu0 0
        %820 = vmatpush1.bf16.msra.mxu0 %v799
        %821 = vmatprep.subr.bf16.mxu0 0
        %822 = vmatpush1.bf16.msra.mxu0 %v800
        %823 = vmatprep.subr.bf16.mxu0 0
        %824 = vmatpush1.bf16.msra.mxu0 %v801
        %825 = vmatprep.subr.bf16.mxu0 0
        %826 = vmatpush1.bf16.msra.mxu0 %v802
        %827 = vmatprep.subr.bf16.mxu0 0
        %828 = vmatpush1.bf16.msra.mxu0 0
        %829 = vmatprep.subr.bf16.mxu0 0
        %830 = vmatpush1.bf16.msra.mxu0 0
        %831 = vmatprep.subr.bf16.mxu0 0
        %832 = vmatpush1.bf16.msra.mxu0 0
        %833 = vmatprep.subr.bf16.mxu0 0
        %834 = vmatpush1.bf16.msra.mxu0 0
        %835 = vmatprep.subr.bf16.mxu0 0
        %836 = vmatpush1.bf16.msra.mxu0 0
        %837 = vmatprep.subr.bf16.mxu0 0
        %838 = vmatpush1.bf16.msra.mxu0 0
        %839 = vmatprep.subr.bf16.mxu0 0
        %840 = vmatpush1.bf16.msra.mxu0 0
        %841 = vmatprep.subr.bf16.mxu0 0
        %842 = vmatpush1.bf16.msra.mxu0 0
        %843 = vmatprep.mubr.bf16.mxu0 0
        %844 = vmatmul.mubr.bf16.gmra.mrb[0].mxu0 %v724
        %v845 = vpop.f32.mrb[0].mxu0
        %v846 = vadd.f32 %v761, %v845
        %v847 = vpop.f32.mrb[0].mxu0
        %v848 = vpop.f32.mrb[0].mxu0
        %v849 = vadd.f32 %v761, %v848
        %v850 = vpop.f32.mrb[0].mxu0
        %851 = vmatprep.mubr.bf16.mxu0 0
        %852 = vmatmul.mubr.bf16.gmra.mrb[0].mxu0 %v725
        %v853 = vpop.f32.mrb[0].mxu0
        %v854 = vadd.f32 %v761, %v853
        %v855 = vpop.f32.mrb[0].mxu0
        %v856 = vpop.f32.mrb[0].mxu0
        %v857 = vadd.f32 %v761, %v856
        %v858 = vpop.f32.mrb[0].mxu0
        %859 = vmatprep.mubr.bf16.mxu0 0
        %860 = vmatmul.mubr.bf16.gmra.mrb[0].mxu0 %v726
        %v861 = vpop.f32.mrb[0].mxu0
        %v862 = vadd.f32 %v761, %v861
        %v863 = vpop.f32.mrb[0].mxu0
        %v864 = vpop.f32.mrb[0].mxu0
        %v865 = vadd.f32 %v761, %v864
        %v866 = vpop.f32.mrb[0].mxu0
        %867 = vmatprep.mubr.bf16.mxu0 0
        %868 = vmatmul.mubr.bf16.gmra.mrb[0].mxu0 %v727
        %v869 = vpop.f32.mrb[0].mxu0
        %v870 = vadd.f32 %v761, %v869
        %v871 = vpop.f32.mrb[0].mxu0
        %v872 = vpop.f32.mrb[0].mxu0
        %v873 = vadd.f32 %v761, %v872
        %v874 = vpop.f32.mrb[0].mxu0
        %875 = vmatprep.mubr.bf16.mxu0 0
        %876 = vmatmul.mubr.bf16.gmra.mrb[0].mxu0 %v728
        %v877 = vpop.f32.mrb[0].mxu0
        %v878 = vadd.f32 %v761, %v877
        %v879 = vpop.f32.mrb[0].mxu0
        %v880 = vpop.f32.mrb[0].mxu0
        %v881 = vadd.f32 %v761, %v880
        %v882 = vpop.f32.mrb[0].mxu0
        %883 = vmatprep.mubr.bf16.mxu0 0
        %884 = vmatmul.mubr.bf16.gmra.mrb[0].mxu0 %v729
        %v885 = vpop.f32.mrb[0].mxu0
        %v886 = vadd.f32 %v761, %v885
        %v887 = vpop.f32.mrb[0].mxu0
        %v888 = vpop.f32.mrb[0].mxu0
        %v889 = vadd.f32 %v761, %v888
        %v890 = vpop.f32.mrb[0].mxu0
        %891 = vmatprep.mubr.bf16.mxu0 0
        %892 = vmatmul.mubr.bf16.gmra.mrb[0].mxu0 %v730
        %v893 = vpop.f32.mrb[0].mxu0
        %v894 = vadd.f32 %v761, %v893
        %v895 = vpop.f32.mrb[0].mxu0
        %v896 = vpop.f32.mrb[0].mxu0
        %v897 = vadd.f32 %v761, %v896
        %v898 = vpop.f32.mrb[0].mxu0
        %899 = vmatprep.mubr.bf16.mxu0 0
        %900 = vmatmul.mubr.bf16.gmra.mrb[0].mxu0 %v731
        %v901 = vpop.f32.mrb[0].mxu0
        %v902 = vadd.f32 %v761, %v901
        %v903 = vpop.f32.mrb[0].mxu0
        %v904 = vpop.f32.mrb[0].mxu0
        %v905 = vadd.f32 %v761, %v904
        %v906 = vpop.f32.mrb[0].mxu0
        %907 = vmatprep.mubr.bf16.mxu0 0
        %908 = vmatmul.mubr.bf16.gmra.mrb[0].mxu0 %v732
        %v909 = vpop.f32.mrb[0].mxu0
        %v910 = vadd.f32 %v761, %v909
        %v911 = vpop.f32.mrb[0].mxu0
        %v912 = vpop.f32.mrb[0].mxu0
        %v913 = vadd.f32 %v761, %v912
        %v914 = vpop.f32.mrb[0].mxu0
        %915 = vmatprep.mubr.bf16.mxu0 0
        %916 = vmatmul.mubr.bf16.gmra.mrb[0].mxu0 %v733
        %v917 = vpop.f32.mrb[0].mxu0
        %v918 = vadd.f32 %v761, %v917
        %v919 = vpop.f32.mrb[0].mxu0
        %v920 = vpop.f32.mrb[0].mxu0
        %v921 = vadd.f32 %v761, %v920
        %v922 = vpop.f32.mrb[0].mxu0
        %923 = vmatprep.mubr.bf16.mxu0 0
        %924 = vmatmul.mubr.bf16.gmra.mrb[0].mxu0 %v734
        %v925 = vpop.f32.mrb[0].mxu0
        %v926 = vadd.f32 %v761, %v925
        %v927 = vpop.f32.mrb[0].mxu0
        %v928 = vpop.f32.mrb[0].mxu0
        %v929 = vadd.f32 %v761, %v928
        %v930 = vpop.f32.mrb[0].mxu0
        %931 = vmatprep.mubr.bf16.mxu0 0
        %932 = vmatmul.mubr.bf16.gmra.mrb[0].mxu0 %v735
        %v933 = vpop.f32.mrb[0].mxu0
        %v934 = vadd.f32 %v761, %v933
        %v935 = vpop.f32.mrb[0].mxu0
        %v936 = vpop.f32.mrb[0].mxu0
        %v937 = vadd.f32 %v761, %v936
        %v938 = vpop.f32.mrb[0].mxu0
        %939 = vmatprep.mubr.bf16.mxu0 0
        %940 = vmatmul.mubr.bf16.gmra.mrb[0].mxu0 %v736
        %v941 = vpop.f32.mrb[0].mxu0
        %v942 = vadd.f32 %v761, %v941
        %v943 = vpop.f32.mrb[0].mxu0
        %v944 = vpop.f32.mrb[0].mxu0
        %v945 = vadd.f32 %v761, %v944
        %v946 = vpop.f32.mrb[0].mxu0
        %947 = vmatprep.mubr.bf16.mxu0 0
        %948 = vmatmul.mubr.bf16.gmra.mrb[0].mxu0 %v737
        %v949 = vpop.f32.mrb[0].mxu0
        %v950 = vadd.f32 %v761, %v949
        %v951 = vpop.f32.mrb[0].mxu0
        %v952 = vpop.f32.mrb[0].mxu0
        %v953 = vadd.f32 %v761, %v952
        %v954 = vpop.f32.mrb[0].mxu0
        %955 = vmatprep.mubr.bf16.mxu0 0
        %956 = vmatmul.mubr.bf16.gmra.mrb[0].mxu0 %v738
        %v957 = vpop.f32.mrb[0].mxu0
        %v958 = vadd.f32 %v761, %v957
        %v959 = vpop.f32.mrb[0].mxu0
        %v960 = vpop.f32.mrb[0].mxu0
        %v961 = vadd.f32 %v761, %v960
        %v962 = vpop.f32.mrb[0].mxu0
        %963 = vmatprep.mubr.bf16.mxu0 0
        %964 = vmatmul.mubr.bf16.gmra.mrb[0].mxu0 %v739
        %v965 = vpop.f32.mrb[0].mxu0
        %v966 = vadd.f32 %v761, %v965
        %v967 = vpop.f32.mrb[0].mxu0
        %v968 = vpop.f32.mrb[0].mxu0
        %v969 = vadd.f32 %v761, %v968
        %v970 = vpop.f32.mrb[0].mxu0
        %971 = vdwg.mxu0
        %v972 = vmax.f32 %v846, 0.0
        %v973 = vmax.f32 %v849, 0.0
        %v974 = vmax.f32 %v854, 0.0
        %v975 = vmax.f32 %v857, 0.0
        %v976 = vmax.f32 %v862, 0.0
        %v977 = vmax.f32 %v865, 0.0
        %v978 = vmax.f32 %v870, 0.0
        %v979 = vmax.f32 %v873, 0.0
        %v980 = vmax.f32 %v878, 0.0
        %v981 = vmax.f32 %v881, 0.0
        %v982 = vmax.f32 %v886, 0.0
        %v983 = vmax.f32 %v889, 0.0
        %v984 = vmax.f32 %v894, 0.0
        %v985 = vmax.f32 %v897, 0.0
        %v986 = vmax.f32 %v902, 0.0
        %v987 = vmax.f32 %v905, 0.0
        %v988 = vmax.f32 %v910, 0.0
        %v989 = vmax.f32 %v913, 0.0
        %v990 = vmax.f32 %v918, 0.0
        %v991 = vmax.f32 %v921, 0.0
        %v992 = vmax.f32 %v926, 0.0
        %v993 = vmax.f32 %v929, 0.0
        %v994 = vmax.f32 %v934, 0.0
        %v995 = vmax.f32 %v937, 0.0
        %v996 = vmax.f32 %v942, 0.0
        %v997 = vmax.f32 %v945, 0.0
        %v998 = vmax.f32 %v950, 0.0
        %v999 = vmax.f32 %v953, 0.0
        %v1000 = vmax.f32 %v958, 0.0
        %v1001 = vmax.f32 %v961, 0.0
        %v1002 = vmax.f32 %v966, 0.0
        %v1003 = vmax.f32 %v969, 0.0
        %v1004 = vadd.f32 %v972, %v973
        %v1005 = vrot.slane %v1004, 4
        %v1006 = vadd.f32 %v1004, %v1005
        %v1007 = vrot.slane %v1006, 2
        %v1008 = vadd.f32 %v1006, %v1007
        %v1009 = vrot.slane %v1008, 1
        %v1010 = vadd.f32 %v1008, %v1009
        %v1011 = vadd.f32 %v974, %v975
        %v1012 = vrot.slane %v1011, 4
        %v1013 = vadd.f32 %v1011, %v1012
        %v1014 = vrot.slane %v1013, 2
        %v1015 = vadd.f32 %v1013, %v1014
        %v1016 = vrot.slane %v1015, 1
        %v1017 = vadd.f32 %v1015, %v1016
        %v1018 = vadd.f32 %v976, %v977
        %v1019 = vrot.slane %v1018, 4
        %v1020 = vadd.f32 %v1018, %v1019
        %v1021 = vrot.slane %v1020, 2
        %v1022 = vadd.f32 %v1020, %v1021
        %v1023 = vrot.slane %v1022, 1
        %v1024 = vadd.f32 %v1022, %v1023
        %v1025 = vadd.f32 %v978, %v979
        %v1026 = vrot.slane %v1025, 4
        %v1027 = vadd.f32 %v1025, %v1026
        %v1028 = vrot.slane %v1027, 2
        %v1029 = vadd.f32 %v1027, %v1028
        %v1030 = vrot.slane %v1029, 1
        %v1031 = vadd.f32 %v1029, %v1030
        %v1032 = vadd.f32 %v980, %v981
        %v1033 = vrot.slane %v1032, 4
        %v1034 = vadd.f32 %v1032, %v1033
        %v1035 = vrot.slane %v1034, 2
        %v1036 = vadd.f32 %v1034, %v1035
        %v1037 = vrot.slane %v1036, 1
        %v1038 = vadd.f32 %v1036, %v1037
        %v1039 = vadd.f32 %v982, %v983
        %v1040 = vrot.slane %v1039, 4
        %v1041 = vadd.f32 %v1039, %v1040
        %v1042 = vrot.slane %v1041, 2
        %v1043 = vadd.f32 %v1041, %v1042
        %v1044 = vrot.slane %v1043, 1
        %v1045 = vadd.f32 %v1043, %v1044
        %v1046 = vadd.f32 %v984, %v985
        %v1047 = vrot.slane %v1046, 4
        %v1048 = vadd.f32 %v1046, %v1047
        %v1049 = vrot.slane %v1048, 2
        %v1050 = vadd.f32 %v1048, %v1049
        %v1051 = vrot.slane %v1050, 1
        %v1052 = vadd.f32 %v1050, %v1051
        %v1053 = vadd.f32 %v986, %v987
        %v1054 = vrot.slane %v1053, 4
        %v1055 = vadd.f32 %v1053, %v1054
        %v1056 = vrot.slane %v1055, 2
        %v1057 = vadd.f32 %v1055, %v1056
        %v1058 = vrot.slane %v1057, 1
        %v1059 = vadd.f32 %v1057, %v1058
        %v1060 = vadd.f32 %v988, %v989
        %v1061 = vrot.slane %v1060, 4
        %v1062 = vadd.f32 %v1060, %v1061
        %v1063 = vrot.slane %v1062, 2
        %v1064 = vadd.f32 %v1062, %v1063
        %v1065 = vrot.slane %v1064, 1
        %v1066 = vadd.f32 %v1064, %v1065
        %v1067 = vadd.f32 %v990, %v991
        %v1068 = vrot.slane %v1067, 4
        %v1069 = vadd.f32 %v1067, %v1068
        %v1070 = vrot.slane %v1069, 2
        %v1071 = vadd.f32 %v1069, %v1070
        %v1072 = vrot.slane %v1071, 1
        %v1073 = vadd.f32 %v1071, %v1072
        %v1074 = vadd.f32 %v992, %v993
        %v1075 = vrot.slane %v1074, 4
        %v1076 = vadd.f32 %v1074, %v1075
        %v1077 = vrot.slane %v1076, 2
        %v1078 = vadd.f32 %v1076, %v1077
        %v1079 = vrot.slane %v1078, 1
        %v1080 = vadd.f32 %v1078, %v1079
        %v1081 = vadd.f32 %v994, %v995
        %v1082 = vrot.slane %v1081, 4
        %v1083 = vadd.f32 %v1081, %v1082
        %v1084 = vrot.slane %v1083, 2
        %v1085 = vadd.f32 %v1083, %v1084
        %v1086 = vrot.slane %v1085, 1
        %v1087 = vadd.f32 %v1085, %v1086
        %v1088 = vadd.f32 %v996, %v997
        %v1089 = vrot.slane %v1088, 4
        %v1090 = vadd.f32 %v1088, %v1089
        %v1091 = vrot.slane %v1090, 2
        %v1092 = vadd.f32 %v1090, %v1091
        %v1093 = vrot.slane %v1092, 1
        %v1094 = vadd.f32 %v1092, %v1093
        %v1095 = vadd.f32 %v998, %v999
        %v1096 = vrot.slane %v1095, 4
        %v1097 = vadd.f32 %v1095, %v1096
        %v1098 = vrot.slane %v1097, 2
        %v1099 = vadd.f32 %v1097, %v1098
        %v1100 = vrot.slane %v1099, 1
        %v1101 = vadd.f32 %v1099, %v1100
        %v1102 = vadd.f32 %v1000, %v1001
        %v1103 = vrot.slane %v1102, 4
        %v1104 = vadd.f32 %v1102, %v1103
        %v1105 = vrot.slane %v1104, 2
        %v1106 = vadd.f32 %v1104, %v1105
        %v1107 = vrot.slane %v1106, 1
        %v1108 = vadd.f32 %v1106, %v1107
        %v1109 = vadd.f32 %v1002, %v1003
        %v1110 = vrot.slane %v1109, 4
        %v1111 = vadd.f32 %v1109, %v1110
        %v1112 = vrot.slane %v1111, 2
        %v1113 = vadd.f32 %v1111, %v1112
        %v1114 = vrot.slane %v1113, 1
        %v1115 = vadd.f32 %v1113, %v1114
        %v1116 = vrcp.pop 16.0
        %v1117 = vmul.f32 %v1010, %v1116
        %v1118 = vmul.f32 %v1017, %v1116
        %v1119 = vmul.f32 %v1024, %v1116
        %v1120 = vmul.f32 %v1031, %v1116
        %v1121 = vmul.f32 %v1038, %v1116
        %v1122 = vmul.f32 %v1045, %v1116
        %v1123 = vmul.f32 %v1052, %v1116
        %v1124 = vmul.f32 %v1059, %v1116
        %v1125 = vmul.f32 %v1066, %v1116
        %v1126 = vmul.f32 %v1073, %v1116
        %v1127 = vmul.f32 %v1080, %v1116
        %v1128 = vmul.f32 %v1087, %v1116
        %v1129 = vmul.f32 %v1094, %v1116
        %v1130 = vmul.f32 %v1101, %v1116
        %v1131 = vmul.f32 %v1108, %v1116
        %v1132 = vmul.f32 %v1115, %v1116
        %v1133 = vld [vmem:[%s5] sm:$0x1]
        %v1135 = vlaneseq
        %v1136 = vshrl.u32 %v1135, 7
        %v1137 = vsub.s32 0, %v1136
        %v1138 = vrot.slane %v1133, %v1137
        %v1140 = vmul.f32 %v1117, %v1138
        %v1141 = vmul.f32 %v1118, %v1138
        %v1142 = vmul.f32 %v1119, %v1138
        %v1143 = vmul.f32 %v1120, %v1138
        %v1144 = vmul.f32 %v1121, %v1138
        %v1145 = vmul.f32 %v1122, %v1138
        %v1146 = vmul.f32 %v1123, %v1138
        %v1147 = vmul.f32 %v1124, %v1138
        %v1148 = vmul.f32 %v1125, %v1138
        %v1149 = vmul.f32 %v1126, %v1138
        %v1150 = vmul.f32 %v1127, %v1138
        %v1151 = vmul.f32 %v1128, %v1138
        %v1152 = vmul.f32 %v1129, %v1138
        %v1153 = vmul.f32 %v1130, %v1138
        %v1154 = vmul.f32 %v1131, %v1138
        %v1155 = vmul.f32 %v1132, %v1138
        %v1172 = vrot.slane %v1141, 7
        %vm1173 = vcmask 1041409
        %v1174 = vsel %vm1173, %v1172, %v1140
        %v1175 = vrot.slane %v1142, 6
        %vm1176 = vcmask 1042434
        %v1177 = vsel %vm1176, %v1175, %v1174
        %v1178 = vrot.slane %v1143, 5
        %vm1179 = vcmask 1043459
        %v1180 = vsel %vm1179, %v1178, %v1177
        %v1181 = vrot.slane %v1144, 4
        %vm1182 = vcmask 1044484
        %v1183 = vsel %vm1182, %v1181, %v1180
        %v1184 = vrot.slane %v1145, 3
        %vm1185 = vcmask 1045509
        %v1186 = vsel %vm1185, %v1184, %v1183
        %v1187 = vrot.slane %v1146, 2
        %vm1188 = vcmask 1046534
        %v1189 = vsel %vm1188, %v1187, %v1186
        %v1190 = vrot.slane %v1147, 1
        %vm1191 = vcmask 1047559
        %v1192 = vsel %vm1191, %v1190, %v1189
        %v1193 = vrot.slane %v1149, 7
        %v1194 = vsel %vm1173, %v1193, %v1148
        %v1195 = vrot.slane %v1150, 6
        %v1196 = vsel %vm1176, %v1195, %v1194
        %v1197 = vrot.slane %v1151, 5
        %v1198 = vsel %vm1179, %v1197, %v1196
        %v1199 = vrot.slane %v1152, 4
        %v1200 = vsel %vm1182, %v1199, %v1198
        %v1201 = vrot.slane %v1153, 3
        %v1202 = vsel %vm1185, %v1201, %v1200
        %v1203 = vrot.slane %v1154, 2
        %v1204 = vsel %vm1188, %v1203, %v1202
        %v1205 = vrot.slane %v1155, 1
        %v1206 = vsel %vm1191, %v1205, %v1204
        %1209 = vadd.xlane.f32.xlu0 %v1192
        %v1210 = vpop.xlane.xlu0 %1209
        %1211 = vadd.xlane.f32.xlu0 %v1206
        %v1212 = vpop.xlane.xlu0 %1211
        %s1213 = sld [smem:[#allocation2]]
        %v1214 = vstv %s1213
        %v1215 = vadd.f32 %v1210, %v1214
        %v1216 = vadd.f32 %v1212, %v1214
        %vm1217 = vcmask 7168
        %1218 = vst.msk [vmem:[%s330] sm:$0xff] %vm1217, %v1215
        %1219 = vst.msk [vmem:[%s330 + $0x8] sm:$0xff] %vm1217, %v1216
        %p1220 = scmp.lt.s32.totalorder %s23, 1
        %s1221 = scalar_select %p1220, %s23, 1
        %s1222 = smul.addr %s1221, 2
        %s1223 = smul.addr %s1222, 8
        %s1224 = scalar_lea.vmem %s7, %s1223
        // Predicated region
        $region61: #{tpu_custom_call.1} parent=47 // pred_check
          %p1225 = pneg %p193
        $region62: #{tpu_custom_call.1} parent=47 // pred_check_branch
          %1227 = sbr.rel (%p1225) target = $region64
        $region63: #{tpu_custom_call.1} parent=47 // pred_region
          _
        $region64: #{tpu_custom_call.1} parent=47 // pred_fallthru
          _
      $region48: #{tpu_custom_call.1} parent=5 // pred_fallthru
        _
      %p1228 = scmp.le.s32.totalorder 2, %s18
      // Predicated region
      $region65: #{tpu_custom_call.1} parent=5 // pred_check
        %p1229 = pneg %p1228
      $region66: #{tpu_custom_call.1} parent=5 // pred_check_branch
        %1231 = sbr.rel (%p1229) target = $region68
      $region67: #{tpu_custom_call.1} parent=5 // pred_region
        %s1232 = ssub.s32 %s18, 2
        // Predicated region
        $region69: #{tpu_custom_call.1} parent=67 // pred_check
          %p1233 = pneg %p199
        $region70: #{tpu_custom_call.1} parent=67 // pred_check_branch
          %1235 = sbr.rel (%p1233) target = $region72
        $region71: #{tpu_custom_call.1} parent=67 // pred_region
          %p1236 = scmp.lt.s32.totalorder %s24, 1
          %s1237 = scalar_select %p1236, %s24, 1
          %s1238 = smul.addr %s1237, 2
          %s1239 = smul.addr %s1238, 8
          %s1240 = scalar_lea.vmem %s7, %s1239
        $region72: #{tpu_custom_call.1} parent=67 // pred_fallthru
          _
      $region68: #{tpu_custom_call.1} parent=5 // pred_fallthru
        _
    $region6: #{tpu_custom_call.1} parent=1 // loop_footer
      %s22 = sadd.s32 1, %s18
    $region7: #{tpu_custom_call.1} parent=1 // loop_footer_branch
      %17 = sbr.rel target = $region3
    $region8: #{tpu_custom_call.1} parent=1 // loop_exit
      _
    %1241 = vsyncpa [#allocation4], 1
    %s1242 = scalar_lea.sflag [#allocation4], 1
    %1243 = vsyncpa %s1242, 1
    %1244 = vsyncpa [#allocation6], 1

</llo_original>
